<compile_context>
chip_gen: v7x
topology: tpu7x:2x2x1
jax: 0.10.0
libtpu: 0.0.40
codegen_flags: <defaults>
</compile_context>

<pallas_src>
import jax
import jax.numpy as jnp
from jax.experimental import pallas as pl
from jax.experimental.pallas import tpu as pltpu


def _pos_embed_kernel(x_ref, w1t_ref, c1_ref, w2t_ref, b2_ref, out_ref):
    # x_ref: (C_in, tn) lane-dense point tile for one batch element.
    x = x_ref[...]
    # Conv1d #1 (k=1) with BatchNorm folded into weights/bias, then ReLU.
    h = jnp.dot(w1t_ref[...], x, preferred_element_type=jnp.float32) + c1_ref[...]
    h = jnp.maximum(h, 0.0)
    # Conv1d #2 (k=1).
    y = jnp.dot(w2t_ref[...], h, preferred_element_type=jnp.float32) + b2_ref[...]
    # Already in (F, tn) orientation -> direct lane-dense store, no transpose.
    out_ref[...] = y.astype(out_ref.dtype)


def _round_up(x, m):
    return ((x + m - 1) // m) * m


_LANE = 128
_VMEM_BUDGET = 20 * 1024 * 1024   # pipeline-buffer budget; fits v5e/v6e/v7x scoped VMEM


def _choose_tile(N, B, F, C_in, tn_hint):
    """Point-axis tile: multiple of 128 (or N itself when N <= 128)."""
    if N <= _LANE:
        return N                                       # single full-dim block
    # Approx VMEM per output column: double-buffered x + double-buffered out
    # + f32 intermediates (h, y); weights are negligible.
    c_pad = _round_up(C_in, 8)
    f_pad = _round_up(F, 8)
    per_col = 4 * (2 * c_pad + 4 * f_pad)
    tn_cap = max(_LANE, (_VMEM_BUDGET // per_col) // _LANE * _LANE)
    tn = max(_LANE, (min(int(tn_hint), tn_cap) // _LANE) * _LANE)
    tn = min(tn, _round_up(N, _LANE))                  # never wider than needed
    # v7x megacore: aim for >= 2 grid steps per TensorCore when there is work.
    if N >= 2 * _LANE and B * pl.cdiv(N, tn) < 4:
        want_tiles = pl.cdiv(4, B)
        tn = min(tn, max(_LANE, _round_up(pl.cdiv(N, want_tiles), _LANE)))
    return tn


def position_embedding_learned(xyz, params, *, tn=4096, out_dtype=jnp.float32):
    """xyz: (B, N, C_in) float32 -> (B, F, N), matching the PyTorch forward."""
    B, N, C_in = xyz.shape
    w1, b1 = params["w1"], params["b1"]
    gamma, beta = params["gamma"], params["beta"]
    run_mean, run_var, eps = params["running_mean"], params["running_var"], params["eps"]
    w2, b2 = params["w2"], params["b2"]
    F = w1.shape[1]

    # ---- fold eval-mode BN + conv1 bias into the first matmul (param glue) ----
    inv_std = 1.0 / jnp.sqrt(run_var + eps)
    scale = gamma * inv_std                                         # (F,)
    w1t = (w1 * scale[None, :]).T.astype(jnp.float32)               # (F, C_in)
    c1 = (b1 * scale + beta - run_mean * scale).reshape(F, 1).astype(jnp.float32)
    w2t = w2.T.astype(jnp.float32)                                  # (F, F)
    b2c = b2.reshape(F, 1).astype(jnp.float32)

    # The module's own xyz.transpose(1, 2); tiny (C_in ~ 3-4) next to the
    # (B, F, N) output traffic, and it makes the kernel's x tile lane-dense.
    x_t = xyz.transpose(0, 2, 1).astype(jnp.float32)                # (B, C_in, N)

    tile = _choose_tile(N, B, F, C_in, tn)
    grid = (B, pl.cdiv(N, tile))

    return pl.pallas_call(
        _pos_embed_kernel,
        out_shape=jax.ShapeDtypeStruct((B, F, N), out_dtype),       # exact, no slice
        grid_spec=pltpu.PrefetchScalarGridSpec(
            num_scalar_prefetch=0,
            grid=grid,
            in_specs=[
                pl.BlockSpec((None, C_in, tile), lambda b, j: (b, 0, j)),  # x tile
                pl.BlockSpec((F, C_in), lambda b, j: (0, 0)),              # BN-folded w1^T
                pl.BlockSpec((F, 1), lambda b, j: (0, 0)),                 # BN-folded bias
                pl.BlockSpec((F, F), lambda b, j: (0, 0)),                 # w2^T
                pl.BlockSpec((F, 1), lambda b, j: (0, 0)),                 # b2
            ],
            out_specs=pl.BlockSpec((None, F, tile), lambda b, j: (b, 0, j)),
        ),
        compiler_params=pltpu.CompilerParams(
            dimension_semantics=("parallel", "parallel"),
            vmem_limit_bytes=32 * 1024 * 1024),
    )(x_t, w1t, c1, w2t, b2c)


def make_params(key, input_channel, num_pos_feats):
    """Deterministic synthetic parameters matching the module's __init__ shapes."""
    k1, k2, k3, k4, k5, k6 = jax.random.split(key, 6)
    # Conv1d(C_in, F, 1): torch weight (F, C_in, 1) -> stored transposed (C_in, F)
    w1 = jax.random.normal(k1, (input_channel, num_pos_feats), jnp.float32) * 0.1
    b1 = jax.random.normal(k2, (num_pos_feats,), jnp.float32) * 0.05
    # BatchNorm1d(F): eval-mode with deterministic (non-trivial) running stats
    gamma = 1.0 + 0.1 * jax.random.normal(k3, (num_pos_feats,), jnp.float32)
    beta = 0.05 * jax.random.normal(k4, (num_pos_feats,), jnp.float32)
    running_mean = 0.1 * jax.random.normal(k5, (num_pos_feats,), jnp.float32)
    running_var = jnp.abs(1.0 + 0.1 * jax.random.normal(k6, (num_pos_feats,),
                                                        jnp.float32))
    # Conv1d(F, F, 1): stored transposed (F_in, F_out)
    k7, k8 = jax.random.split(k6, 2)
    w2 = jax.random.normal(k7, (num_pos_feats, num_pos_feats), jnp.float32) * 0.1
    b2 = jax.random.normal(k8, (num_pos_feats,), jnp.float32) * 0.05
    return dict(w1=w1, b1=b1, gamma=gamma, beta=beta, running_mean=running_mean,
                running_var=running_var, eps=1e-5, w2=w2, b2=b2)


def _reference(xyz, p):
    """Pure-JAX reference reproducing the PyTorch forward (eval-mode BN)."""
    x = jnp.einsum("bnc,cf->bnf", xyz, p["w1"]) + p["b1"]
    inv_std = 1.0 / jnp.sqrt(p["running_var"] + p["eps"])
    x = (x - p["running_mean"]) * inv_std * p["gamma"] + p["beta"]
    x = jnp.maximum(x, 0.0)
    x = jnp.einsum("bnf,fg->bng", x, p["w2"]) + p["b2"]
    return x.transpose(0, 2, 1)  # (B, F, N)


if __name__ == "__main__":
    key = jax.random.PRNGKey(0)
    kx1, kp1, kx2, kp2, kx3, kp3 = jax.random.split(key, 6)

    # Case 1: tiny shapes consistent with the module (single full-dim block).
    B, N, C_in, F = 2, 16, 4, 32
    xyz = jax.random.normal(kx1, (B, N, C_in), jnp.float32)
    params = make_params(kp1, C_in, F)
    out = jax.block_until_ready(position_embedding_learned(xyz, params))
    ref = _reference(xyz, params)
    assert out.shape == (B, F, N), out.shape
    assert jnp.allclose(out, ref, atol=1e-4, rtol=1e-4), \
        float(jnp.max(jnp.abs(out - ref)))

    # Case 2: N not a multiple of 128 -> single tile with masked tail store.
    B2, N2, C2, F2 = 2, 200, 4, 64
    xyz2 = jax.random.normal(kx2, (B2, N2, C2), jnp.float32)
    params2 = make_params(kp2, C2, F2)
    out2 = jax.block_until_ready(position_embedding_learned(xyz2, params2))
    ref2 = _reference(xyz2, params2)
    assert out2.shape == (B2, F2, N2), out2.shape
    assert jnp.allclose(out2, ref2, atol=1e-4, rtol=1e-4), \
        float(jnp.max(jnp.abs(out2 - ref2)))

    # Case 3: real-xyz C_in=3, multi-tile grid + partial tail block.
    B3, N3, C3, F3 = 2, 1000, 3, 64
    xyz3 = jax.random.normal(kx3, (B3, N3, C3), jnp.float32)
    params3 = make_params(kp3, C3, F3)
    out3 = jax.block_until_ready(position_embedding_learned(xyz3, params3))
    ref3 = _reference(xyz3, params3)
    assert out3.shape == (B3, F3, N3), out3.shape
    assert jnp.allclose(out3, ref3, atol=1e-4, rtol=1e-4), \
        float(jnp.max(jnp.abs(out3 - ref3)))

    print("KERNEL_OK")
</pallas_src>

<mosaic_0001>
module attributes {stable_mosaic.version = 11 : i64} {
  func.func @_pos_embed_kernel(%arg0: i32, %arg1: i32, %arg2: memref<1x4x16xf32, #tpu.memory_space<vmem>>, %arg3: memref<32x4xf32, #tpu.memory_space<vmem>>, %arg4: memref<32x1xf32, #tpu.memory_space<vmem>>, %arg5: memref<32x32xf32, #tpu.memory_space<vmem>>, %arg6: memref<32x1xf32, #tpu.memory_space<vmem>>, %arg7: memref<1x32x16xf32, #tpu.memory_space<vmem>>) attributes {dimension_semantics = [#tpu.dimension_semantics<parallel>, #tpu.dimension_semantics<parallel>], iteration_bounds = array<i64: 2, 1>, scalar_prefetch = 0 : i64, scratch_operands = 0 : i64, tpu.core_type = #tpu.core_type<tc>, window_params = [{transform_indices = @transform_0, window_bounds = array<i64: 1, 4, 16>}, {pipeline_mode = #tpu.pipeline_mode<synchronous>, transform_indices = @transform_1, window_bounds = array<i64: 32, 4>}, {pipeline_mode = #tpu.pipeline_mode<synchronous>, transform_indices = @transform_2, window_bounds = array<i64: 32, 1>}, {pipeline_mode = #tpu.pipeline_mode<synchronous>, transform_indices = @transform_3, window_bounds = array<i64: 32, 32>}, {pipeline_mode = #tpu.pipeline_mode<synchronous>, transform_indices = @transform_4, window_bounds = array<i64: 32, 1>}, {transform_indices = @transform_5, window_bounds = array<i64: 1, 32, 16>}]} {
    %c0 = arith.constant 0 : index
    %c0_0 = arith.constant 0 : index
    %c0_1 = arith.constant 0 : index
    %0 = vector.load %arg2[%c0, %c0_0, %c0_1] : memref<1x4x16xf32, #tpu.memory_space<vmem>>, vector<1x4x16xf32>
    %1 = vector.shape_cast %0 : vector<1x4x16xf32> to vector<4x16xf32>
    %c0_2 = arith.constant 0 : index
    %c0_3 = arith.constant 0 : index
    %2 = vector.load %arg3[%c0_2, %c0_3] : memref<32x4xf32, #tpu.memory_space<vmem>>, vector<32x4xf32>
    %cst = arith.constant dense<0.000000e+00> : vector<32x16xf32>
    %3 = tpu.matmul %2, %1, %cst {dimension_numbers = #tpu.dot_dimension_numbers<[1], [0], [0], [1], [0, 0, 1, 1], [], []>} : vector<32x4xf32>, vector<4x16xf32>, vector<32x16xf32> -> vector<32x16xf32>
    %c0_4 = arith.constant 0 : index
    %c0_5 = arith.constant 0 : index
    %4 = vector.load %arg4[%c0_4, %c0_5] : memref<32x1xf32, #tpu.memory_space<vmem>>, vector<32x1xf32>
    %5 = vector.broadcast %4 : vector<32x1xf32> to vector<32x16xf32>
    %6 = arith.addf %3, %5 : vector<32x16xf32>
    %cst_6 = arith.constant 0.000000e+00 : f32
    %7 = vector.broadcast %cst_6 : f32 to vector<32x16xf32>
    %8 = arith.maximumf %6, %7 : vector<32x16xf32>
    %c0_7 = arith.constant 0 : index
    %c0_8 = arith.constant 0 : index
    %9 = vector.load %arg5[%c0_7, %c0_8] : memref<32x32xf32, #tpu.memory_space<vmem>>, vector<32x32xf32>
    %cst_9 = arith.constant dense<0.000000e+00> : vector<32x16xf32>
    %10 = tpu.matmul %9, %8, %cst_9 {dimension_numbers = #tpu.dot_dimension_numbers<[1], [0], [0], [1], [0, 0, 1, 1], [], []>} : vector<32x32xf32>, vector<32x16xf32>, vector<32x16xf32> -> vector<32x16xf32>
    %c0_10 = arith.constant 0 : index
    %c0_11 = arith.constant 0 : index
    %11 = vector.load %arg6[%c0_10, %c0_11] : memref<32x1xf32, #tpu.memory_space<vmem>>, vector<32x1xf32>
    %12 = vector.broadcast %11 : vector<32x1xf32> to vector<32x16xf32>
    %13 = arith.addf %10, %12 : vector<32x16xf32>
    %c0_12 = arith.constant 0 : index
    %c0_13 = arith.constant 0 : index
    %c0_14 = arith.constant 0 : index
    %14 = vector.load %arg7[%c0_12, %c0_13, %c0_14] : memref<1x32x16xf32, #tpu.memory_space<vmem>>, vector<1x32x16xf32>
    %15 = vector.shape_cast %14 : vector<1x32x16xf32> to vector<32x16xf32>
    %16 = vector.shape_cast %13 : vector<32x16xf32> to vector<1x32x16xf32>
    tpu.vector_store %arg7[%c0_12, %c0_13, %c0_14], %16 {strides = array<i32>} : memref<1x32x16xf32, #tpu.memory_space<vmem>>, vector<1x32x16xf32>,
    return
  }
  func.func @transform_0(%arg0: i32, %arg1: i32) -> (i32, i32, i32) {
    %c0_i32 = arith.constant 0 : i32
    %c0_i32_0 = arith.constant 0 : i32
    return %arg0, %c0_i32, %arg1 : i32, i32, i32
  }
  func.func @transform_1(%arg0: i32, %arg1: i32) -> (i32, i32) {
    %c0_i32 = arith.constant 0 : i32
    %c0_i32_0 = arith.constant 0 : i32
    %c0_i32_1 = arith.constant 0 : i32
    return %c0_i32, %c0_i32_0 : i32, i32
  }
  func.func @transform_2(%arg0: i32, %arg1: i32) -> (i32, i32) {
    %c0_i32 = arith.constant 0 : i32
    %c0_i32_0 = arith.constant 0 : i32
    %c0_i32_1 = arith.constant 0 : i32
    return %c0_i32, %c0_i32_0 : i32, i32
  }
  func.func @transform_3(%arg0: i32, %arg1: i32) -> (i32, i32) {
    %c0_i32 = arith.constant 0 : i32
    %c0_i32_0 = arith.constant 0 : i32
    %c0_i32_1 = arith.constant 0 : i32
    return %c0_i32, %c0_i32_0 : i32, i32
  }
  func.func @transform_4(%arg0: i32, %arg1: i32) -> (i32, i32) {
    %c0_i32 = arith.constant 0 : i32
    %c0_i32_0 = arith.constant 0 : i32
    %c0_i32_1 = arith.constant 0 : i32
    return %c0_i32, %c0_i32_0 : i32, i32
  }
  func.func @transform_5(%arg0: i32, %arg1: i32) -> (i32, i32, i32) {
    %c0_i32 = arith.constant 0 : i32
    %c0_i32_0 = arith.constant 0 : i32
    return %arg0, %c0_i32, %arg1 : i32, i32, i32
  }
}

</mosaic_0001>

<llo_original>
// kernel: tpu_custom_call.1
$region0: #{tpu_custom_call.1}
  #allocation0 [shape = 'u32[]', space=smem, size = 0x4, offset = 0x4, fixed_abs, tag = 'smem constant byte address 0x4 - core index']
  #allocation1 [shape = 'u32[144,128]{1,0:T(1,128)}', space=vmem, size = 0x12000, scoped, tag = 'internal scratch']
  %s0 = inlined_call_operand.vmem [shape: f32[2,4,16], index: 0, kind: input, shape index: {}]
  %s1 = inlined_call_operand.vmem [shape: f32[32,4], index: 1, kind: input, shape index: {}]
  %s2 = inlined_call_operand.vmem [shape: f32[32,1], index: 2, kind: input, shape index: {}]
  %s3 = inlined_call_operand.vmem [shape: f32[32,32], index: 3, kind: input, shape index: {}]
  %s4 = inlined_call_operand.vmem [shape: f32[32,1], index: 4, kind: input, shape index: {}]
  %s5 = inlined_call_operand.vmem [shape: f32[2,32,16], index: 5, kind: output, shape index: {}]
  %s6 = sld [smem:[#allocation0]]
  $region53: #{tpu_custom_call.1} parent=0
    _
  %s8 = ssub.s32 1, %s6
  %s9 = scalar_select 0, %s8, %s6
  loop: start=0, step=1, limit=4
  $region2: #{tpu_custom_call.1} parent=0 // loop_pre_header
    _
  $region3: #{tpu_custom_call.1} parent=0 // loop_header
    %s11 = sphi 0, %s15
    %p12 = scmp.ge.s32.totalorder %s11, 4
    %s18 = sphi 0, %s30
    %s19 = sphi 0, %s26
    %s20 = sphi 0, %s18
    %s21 = sphi 0, %s19
    %s22 = sphi 0, %s20
    %s23 = sphi 0, %s21
    %s35 = sphi 0, %s37
    %s38 = sphi 0, %s35
    %s39 = sphi 0, %s38
    %s55 = sphi 0, %s39
    %s59 = sphi 0, %s59
    %s61 = sphi 0, %s59
    %s62 = sphi 0, %s61
    %s76 = sphi 0, %s62
    %s80 = sphi 0, %s80
    %s82 = sphi 0, %s80
    %s83 = sphi 0, %s82
    %s97 = sphi 0, %s83
    %s101 = sphi 0, %s101
    %s103 = sphi 0, %s101
    %s104 = sphi 0, %s103
    %s118 = sphi 0, %s104
    %s122 = sphi 0, %s122
    %s124 = sphi 0, %s122
    %s125 = sphi 0, %s124
    %s139 = sphi 0, %s125
    %s147 = sphi 0, %s149
    %s150 = sphi 0, %s147
    %s151 = sphi 0, %s150
    %s167 = sphi 0, %s151
  $region4: #{tpu_custom_call.1} parent=0 // loop_header_branch
    %14 = sbr.rel (%p12) target = $region8
  $region5: #{tpu_custom_call.1} parent=0 // loop_body
    %s16 = ssub.s32 %s11, 1
    %s17 = ssub.s32 %s11, 2
    %s24 = sadd.s32 1, %s19
    %p25 = scmp.ge.s32.totalorder %s24, 1
    %s26 = scalar_select %p25, 0, %s24
    %s27 = sadd.s32 1, %s18
    %s28 = scalar_select %p25, %s27, %s18
    %p29 = scmp.ge.s32.totalorder %s28, 2
    %s30 = scalar_select %p29, 0, %s28
    %s31 = ssub.s32 %s18, %s30
    %s32 = ssub.s32 %s19, %s26
    %s33 = sor.u32 %s31, %s32
    %p34 = scmp.eq.s32.totalorder %s33, 0
    %s36 = sadd.s32 %s35, 1
    %s37 = scalar_select %p34, %s35, %s36
    %p40 = pneg %p34
    %p41 = scmp.eq.s32.totalorder %s11, 1
    %p42 = por %p40, %p41
    %p43 = scmp.ne.s32.totalorder %s35, %s38
    %p44 = scmp.eq.s32.totalorder %s11, 0
    %p45 = por %p43, %p44
    %p46 = scmp.ne.s32.totalorder %s35, %s38
    %p47 = scmp.eq.s32.totalorder %s16, 1
    %p48 = por %p46, %p47
    %p49 = scmp.ne.s32.totalorder %s38, %s39
    %p50 = scmp.eq.s32.totalorder %s16, 0
    %p51 = por %p49, %p50
    %p52 = scmp.ne.s32.totalorder %s38, %s39
    %p53 = scmp.eq.s32.totalorder %s17, 1
    %p54 = por %p52, %p53
    %p56 = scmp.ne.s32.totalorder %s39, %s55
    %p57 = scmp.eq.s32.totalorder %s17, 0
    %p58 = por %p56, %p57
    %s60 = sadd.s32 %s59, 1
    %p63 = scmp.eq.s32.totalorder %s11, 1
    %p64 = scmp.ne.s32.totalorder %s59, %s61
    %p65 = scmp.eq.s32.totalorder %s11, 0
    %p66 = por %p64, %p65
    %p67 = scmp.ne.s32.totalorder %s59, %s61
    %p68 = scmp.eq.s32.totalorder %s16, 1
    %p69 = por %p67, %p68
    %p70 = scmp.ne.s32.totalorder %s61, %s62
    %p71 = scmp.eq.s32.totalorder %s16, 0
    %p72 = por %p70, %p71
    %p73 = scmp.ne.s32.totalorder %s61, %s62
    %p74 = scmp.eq.s32.totalorder %s17, 1
    %p75 = por %p73, %p74
    %p77 = scmp.ne.s32.totalorder %s62, %s76
    %p78 = scmp.eq.s32.totalorder %s17, 0
    %p79 = por %p77, %p78
    %s81 = sadd.s32 %s80, 1
    %p84 = scmp.eq.s32.totalorder %s11, 1
    %p85 = scmp.ne.s32.totalorder %s80, %s82
    %p86 = scmp.eq.s32.totalorder %s11, 0
    %p87 = por %p85, %p86
    %p88 = scmp.ne.s32.totalorder %s80, %s82
    %p89 = scmp.eq.s32.totalorder %s16, 1
    %p90 = por %p88, %p89
    %p91 = scmp.ne.s32.totalorder %s82, %s83
    %p92 = scmp.eq.s32.totalorder %s16, 0
    %p93 = por %p91, %p92
    %p94 = scmp.ne.s32.totalorder %s82, %s83
    %p95 = scmp.eq.s32.totalorder %s17, 1
    %p96 = por %p94, %p95
    %p98 = scmp.ne.s32.totalorder %s83, %s97
    %p99 = scmp.eq.s32.totalorder %s17, 0
    %p100 = por %p98, %p99
    %s102 = sadd.s32 %s101, 1
    %p105 = scmp.eq.s32.totalorder %s11, 1
    %p106 = scmp.ne.s32.totalorder %s101, %s103
    %p107 = scmp.eq.s32.totalorder %s11, 0
    %p108 = por %p106, %p107
    %p109 = scmp.ne.s32.totalorder %s101, %s103
    %p110 = scmp.eq.s32.totalorder %s16, 1
    %p111 = por %p109, %p110
    %p112 = scmp.ne.s32.totalorder %s103, %s104
    %p113 = scmp.eq.s32.totalorder %s16, 0
    %p114 = por %p112, %p113
    %p115 = scmp.ne.s32.totalorder %s103, %s104
    %p116 = scmp.eq.s32.totalorder %s17, 1
    %p117 = por %p115, %p116
    %p119 = scmp.ne.s32.totalorder %s104, %s118
    %p120 = scmp.eq.s32.totalorder %s17, 0
    %p121 = por %p119, %p120
    %s123 = sadd.s32 %s122, 1
    %p126 = scmp.eq.s32.totalorder %s11, 1
    %p127 = scmp.ne.s32.totalorder %s122, %s124
    %p128 = scmp.eq.s32.totalorder %s11, 0
    %p129 = por %p127, %p128
    %p130 = scmp.ne.s32.totalorder %s122, %s124
    %p131 = scmp.eq.s32.totalorder %s16, 1
    %p132 = por %p130, %p131
    %p133 = scmp.ne.s32.totalorder %s124, %s125
    %p134 = scmp.eq.s32.totalorder %s16, 0
    %p135 = por %p133, %p134
    %p136 = scmp.ne.s32.totalorder %s124, %s125
    %p137 = scmp.eq.s32.totalorder %s17, 1
    %p138 = por %p136, %p137
    %p140 = scmp.ne.s32.totalorder %s125, %s139
    %p141 = scmp.eq.s32.totalorder %s17, 0
    %p142 = por %p140, %p141
    %s143 = ssub.s32 %s18, %s30
    %s144 = ssub.s32 %s19, %s26
    %s145 = sor.u32 %s143, %s144
    %p146 = scmp.eq.s32.totalorder %s145, 0
    %s148 = sadd.s32 %s147, 1
    %s149 = scalar_select %p146, %s147, %s148
    %p152 = pneg %p146
    %p153 = scmp.eq.s32.totalorder %s11, 1
    %p154 = por %p152, %p153
    %p155 = scmp.ne.s32.totalorder %s147, %s150
    %p156 = scmp.eq.s32.totalorder %s11, 0
    %p157 = por %p155, %p156
    %p158 = scmp.ne.s32.totalorder %s147, %s150
    %p159 = scmp.eq.s32.totalorder %s16, 1
    %p160 = por %p158, %p159
    %p161 = scmp.ne.s32.totalorder %s150, %s151
    %p162 = scmp.eq.s32.totalorder %s16, 0
    %p163 = por %p161, %p162
    %p164 = scmp.ne.s32.totalorder %s150, %s151
    %p165 = scmp.eq.s32.totalorder %s17, 1
    %p166 = por %p164, %p165
    %p168 = scmp.ne.s32.totalorder %s151, %s167
    %p169 = scmp.eq.s32.totalorder %s17, 0
    %p170 = por %p168, %p169
    %p171 = scmp.le.s32.totalorder 1, %s11
    %p172 = scmp.lt.s32.totalorder %s11, 3
    %p173 = pnand %p171, %p172
    %p174 = pneg %p173
    // Predicated region
    $region9: #{tpu_custom_call.1} parent=5 // pred_check
      _
    $region10: #{tpu_custom_call.1} parent=5 // pred_check_branch
      %176 = sbr.rel (%p173) target = $region12
    $region11: #{tpu_custom_call.1} parent=5 // pred_region
      %s177 = ssub.s32 %s11, 1
      // Predicated region
      $region13: #{tpu_custom_call.1} parent=11 // pred_check
        %p178 = pneg %p72
      $region14: #{tpu_custom_call.1} parent=11 // pred_check_branch
        %180 = sbr.rel (%p178) target = $region16
      $region15: #{tpu_custom_call.1} parent=11 // pred_region
        _
      $region16: #{tpu_custom_call.1} parent=11 // pred_fallthru
        _
      // Predicated region
      $region17: #{tpu_custom_call.1} parent=11 // pred_check
        %p181 = pneg %p93
      $region18: #{tpu_custom_call.1} parent=11 // pred_check_branch
        %183 = sbr.rel (%p181) target = $region20
      $region19: #{tpu_custom_call.1} parent=11 // pred_region
        _
      $region20: #{tpu_custom_call.1} parent=11 // pred_fallthru
        _
      // Predicated region
      $region21: #{tpu_custom_call.1} parent=11 // pred_check
        %p184 = pneg %p114
      $region22: #{tpu_custom_call.1} parent=11 // pred_check_branch
        %186 = sbr.rel (%p184) target = $region24
      $region23: #{tpu_custom_call.1} parent=11 // pred_region
        _
      $region24: #{tpu_custom_call.1} parent=11 // pred_fallthru
        _
      // Predicated region
      $region25: #{tpu_custom_call.1} parent=11 // pred_check
        %p187 = pneg %p135
      $region26: #{tpu_custom_call.1} parent=11 // pred_check_branch
        %189 = sbr.rel (%p187) target = $region28
      $region27: #{tpu_custom_call.1} parent=11 // pred_region
        _
      $region28: #{tpu_custom_call.1} parent=11 // pred_fallthru
        _
    $region12: #{tpu_custom_call.1} parent=5 // pred_fallthru
      _
    %p190 = scmp.lt.s32.totalorder %s11, 2
    // Predicated region
    $region29: #{tpu_custom_call.1} parent=5 // pred_check
      %p191 = pneg %p190
    $region30: #{tpu_custom_call.1} parent=5 // pred_check_branch
      %193 = sbr.rel (%p191) target = $region32
    $region31: #{tpu_custom_call.1} parent=5 // pred_region
      // Predicated region
      $region33: #{tpu_custom_call.1} parent=31 // pred_check
        %p194 = pneg %p45
      $region34: #{tpu_custom_call.1} parent=31 // pred_check_branch
        %196 = sbr.rel (%p194) target = $region36
      $region35: #{tpu_custom_call.1} parent=31 // pred_region
        %p197 = scmp.lt.s32.totalorder %s18, 1
        %s198 = scalar_select %p197, %s18, 1
        %p199 = scmp.lt.s32.totalorder %s19, 0
        %s200 = scalar_select %p199, %s19, 0
        %s201 = sadd.s32 %s200, %s198
        %s202 = smul.addr %s201, 4
        %s203 = scalar_lea.vmem %s0, %s202
      $region36: #{tpu_custom_call.1} parent=31 // pred_fallthru
        _
    $region32: #{tpu_custom_call.1} parent=5 // pred_fallthru
      _
    %p204 = scmp.le.s32.totalorder 1, %s11
    %p205 = scmp.lt.s32.totalorder %s11, 3
    %p206 = pnand %p204, %p205
    %p207 = pneg %p206
    // Predicated region
    $region37: #{tpu_custom_call.1} parent=5 // pred_check
      _
    $region38: #{tpu_custom_call.1} parent=5 // pred_check_branch
      %209 = sbr.rel (%p206) target = $region40
    $region39: #{tpu_custom_call.1} parent=5 // pred_region
      %s210 = ssub.s32 %s11, 1
      %p211 = scmp.lt.s32.totalorder %s20, 1
      %s212 = scalar_select %p211, %s20, 1
      %p213 = scmp.lt.s32.totalorder %s21, 0
      %s214 = scalar_select %p213, %s21, 0
      %s215 = sadd.s32 %s214, %s212
      %s216 = smul.addr %s215, 4
      %s217 = scalar_lea.vmem %s0, %s216
      %p218 = pneg %p51
      %p219 = pneg %p48
      %p220 = pneg %p72
      %p221 = pneg %p69
      %p222 = pneg %p93
      %p223 = pneg %p90
      %p224 = pneg %p114
      %p225 = pneg %p111
      %p226 = pneg %p135
      %p227 = pneg %p132
      %p228 = pneg %p163
      %p229 = pneg %p160
      %p230 = scmp.lt.s32.totalorder %s20, 1
      %s231 = scalar_select %p230, %s20, 1
      %p232 = scmp.lt.s32.totalorder %s21, 0
      %s233 = scalar_select %p232, %s21, 0
      %s234 = smul.addr %s231, 4
      %s235 = sadd.s32 %s233, %s234
      %s236 = smul.addr %s235, 8
      %s237 = scalar_lea.vmem %s5, %s236
      %p238 = scmp.lt.s32.totalorder %s20, 1
      %s239 = scalar_select %p238, %s20, 1
      %p240 = scmp.lt.s32.totalorder %s21, 0
      %s241 = scalar_select %p240, %s21, 0
      %s242 = sadd.s32 %s241, %s239
      %s243 = smul.addr %s242, 4
      %s244 = scalar_lea.vmem %s0, %s243
      %p245 = scmp.lt.s32.totalorder %s20, 1
      %s246 = scalar_select %p245, %s20, 1
      %p247 = scmp.lt.s32.totalorder %s21, 0
      %s248 = scalar_select %p247, %s21, 0
      %s249 = smul.addr %s246, 4
      %s250 = sadd.s32 %s248, %s249
      %s251 = smul.addr %s250, 8
      %s252 = scalar_lea.vmem %s5, %s251
      %v253 = vld [vmem:[%s244] sm:$0xf]
      %v254 = vld [vmem:[%s1] sm:$0xff]
      %v255 = vld [vmem:[%s1 + $0x8] sm:$0xff]
      %v256 = vld [vmem:[%s1 + $0x10] sm:$0xff]
      %v257 = vld [vmem:[%s1 + $0x18] sm:$0xff]
      %v258 = vld [vmem:[%s2] sm:$0xff]
      %v259 = vld [vmem:[%s2 + $0x8] sm:$0xff]
      %v260 = vld [vmem:[%s2 + $0x10] sm:$0xff]
      %v261 = vld [vmem:[%s2 + $0x18] sm:$0xff]
      %263 = vset.pattern.permute.xlu0 0
      %264 = vperm.xlu0 %263, %v258
      %v265 = vpop.permute.xlu0 %264
      %268 = vset.pattern.permute.xlu0 0
      %269 = vperm.xlu0 %268, %v259
      %v270 = vpop.permute.xlu0 %269
      %273 = vset.pattern.permute.xlu0 0
      %274 = vperm.xlu0 %273, %v260
      %v275 = vpop.permute.xlu0 %274
      %278 = vset.pattern.permute.xlu0 0
      %279 = vperm.xlu0 %278, %v261
      %v280 = vpop.permute.xlu0 %279
      %vm282 = vcmask 31744
      %v284 = vsel %vm282, %v254, 0
      %v287 = vsel %vm282, %v255, 0
      %v290 = vsel %vm282, %v256, 0
      %v293 = vsel %vm282, %v257, 0
      %vm295 = vcmask 1043456
      %v297 = vsel %vm295, %v253, 0
      %299 = vmatprep.subr.mxu0 0.0
      %300 = vmatpush1.msra.mxu0 %v297
      %301 = vmatprep.subr.mxu0 0.0
      %302 = vmatpush1.msra.mxu0 0.0
      %303 = vmatprep.subr.mxu0 0.0
      %304 = vmatpush1.msra.mxu0 0.0
      %305 = vmatprep.subr.mxu0 0.0
      %306 = vmatpush1.msra.mxu0 0.0
      %307 = vmatprep.subr.mxu0 0.0
      %308 = vmatpush1.msra.mxu0 0.0
      %309 = vmatprep.subr.mxu0 0.0
      %310 = vmatpush1.msra.mxu0 0.0
      %311 = vmatprep.subr.mxu0 0.0
      %312 = vmatpush1.msra.mxu0 0.0
      %313 = vmatprep.subr.mxu0 0.0
      %314 = vmatpush1.msra.mxu0 0.0
      %315 = vmatprep.subr.mxu0 0.0
      %316 = vmatpush1.msra.mxu0 0.0
      %317 = vmatprep.subr.mxu0 0.0
      %318 = vmatpush1.msra.mxu0 0.0
      %319 = vmatprep.subr.mxu0 0.0
      %320 = vmatpush1.msra.mxu0 0.0
      %321 = vmatprep.subr.mxu0 0.0
      %322 = vmatpush1.msra.mxu0 0.0
      %323 = vmatprep.subr.mxu0 0.0
      %324 = vmatpush1.msra.mxu0 0.0
      %325 = vmatprep.subr.mxu0 0.0
      %326 = vmatpush1.msra.mxu0 0.0
      %327 = vmatprep.subr.mxu0 0.0
      %328 = vmatpush1.msra.mxu0 0.0
      %329 = vmatprep.subr.mxu0 0.0
      %330 = vmatpush1.msra.mxu0 0.0
      %331 = vmatprep.subr.mxu0 0.0
      %332 = vmatpush1.msra.mxu0 0.0
      %333 = vmatprep.subr.mxu0 0.0
      %334 = vmatpush1.msra.mxu0 0.0
      %335 = vmatprep.subr.mxu0 0.0
      %336 = vmatpush1.msra.mxu0 0.0
      %337 = vmatprep.subr.mxu0 0.0
      %338 = vmatpush1.msra.mxu0 0.0
      %339 = vmatprep.subr.mxu0 0.0
      %340 = vmatpush1.msra.mxu0 0.0
      %341 = vmatprep.subr.mxu0 0.0
      %342 = vmatpush1.msra.mxu0 0.0
      %343 = vmatprep.subr.mxu0 0.0
      %344 = vmatpush1.msra.mxu0 0.0
      %345 = vmatprep.subr.mxu0 0.0
      %346 = vmatpush1.msra.mxu0 0.0
      %347 = vmatprep.subr.mxu0 0.0
      %348 = vmatpush1.msra.mxu0 0.0
      %349 = vmatprep.subr.mxu0 0.0
      %350 = vmatpush1.msra.mxu0 0.0
      %351 = vmatprep.subr.mxu0 0.0
      %352 = vmatpush1.msra.mxu0 0.0
      %353 = vmatprep.subr.mxu0 0.0
      %354 = vmatpush1.msra.mxu0 0.0
      %355 = vmatprep.subr.mxu0 0.0
      %356 = vmatpush1.msra.mxu0 0.0
      %357 = vmatprep.subr.mxu0 0.0
      %358 = vmatpush1.msra.mxu0 0.0
      %359 = vmatprep.subr.mxu0 0.0
      %360 = vmatpush1.msra.mxu0 0.0
      %361 = vmatprep.subr.mxu0 0.0
      %362 = vmatpush1.msra.mxu0 0.0
      %363 = vmatprep.mubr.f32.mxu0 0.0
      %364 = vmatmul.mubr.f32.gmra.mrb[0].mxu0 %v284
      %v365 = vpop.f32.mrb[0].mxu0
      %v366 = vadd.f32 %v265, %v365
      %v367 = vpop.f32.mrb[0].mxu0
      %368 = vmatprep.mubr.f32.mxu0 0.0
      %369 = vmatmul.mubr.f32.gmra.mrb[0].mxu0 %v287
      %v370 = vpop.f32.mrb[0].mxu0
      %v371 = vadd.f32 %v270, %v370
      %v372 = vpop.f32.mrb[0].mxu0
      %373 = vmatprep.mubr.f32.mxu0 0.0
      %374 = vmatmul.mubr.f32.gmra.mrb[0].mxu0 %v290
      %v375 = vpop.f32.mrb[0].mxu0
      %v376 = vadd.f32 %v275, %v375
      %v377 = vpop.f32.mrb[0].mxu0
      %378 = vmatprep.mubr.f32.mxu0 0.0
      %379 = vmatmul.mubr.f32.gmra.mrb[0].mxu0 %v293
      %v380 = vpop.f32.mrb[0].mxu0
      %v381 = vadd.f32 %v280, %v380
      %v382 = vpop.f32.mrb[0].mxu0
      %383 = vdwg.mxu0
      %v384 = vmax.f32 %v366, 0.0
      %v385 = vmax.f32 %v371, 0.0
      %v386 = vmax.f32 %v376, 0.0
      %v387 = vmax.f32 %v381, 0.0
      %v388 = vld [vmem:[%s3] sm:$0xff]
      %v389 = vld [vmem:[%s3 + $0x8] sm:$0xff]
      %v390 = vld [vmem:[%s3 + $0x10] sm:$0xff]
      %v391 = vld [vmem:[%s3 + $0x18] sm:$0xff]
      %v392 = vld [vmem:[%s4] sm:$0xff]
      %v393 = vld [vmem:[%s4 + $0x8] sm:$0xff]
      %v394 = vld [vmem:[%s4 + $0x10] sm:$0xff]
      %v395 = vld [vmem:[%s4 + $0x18] sm:$0xff]
      %397 = vset.pattern.permute.xlu0 0
      %398 = vperm.xlu0 %397, %v392
      %v399 = vpop.permute.xlu0 %398
      %402 = vset.pattern.permute.xlu0 0
      %403 = vperm.xlu0 %402, %v393
      %v404 = vpop.permute.xlu0 %403
      %407 = vset.pattern.permute.xlu0 0
      %408 = vperm.xlu0 %407, %v394
      %v409 = vpop.permute.xlu0 %408
      %412 = vset.pattern.permute.xlu0 0
      %413 = vperm.xlu0 %412, %v395
      %v414 = vpop.permute.xlu0 %413
      %vm416 = vcmask 261120
      %v418 = vsel %vm416, %v388, 0
      %v421 = vsel %vm416, %v389, 0
      %v424 = vsel %vm416, %v390, 0
      %v427 = vsel %vm416, %v391, 0
      %429 = vmatprep.subr.mxu0 0.0
      %430 = vmatpush1.msra.mxu0 %v384
      %431 = vmatprep.subr.mxu0 0.0
      %432 = vmatpush1.msra.mxu0 %v385
      %433 = vmatprep.subr.mxu0 0.0
      %434 = vmatpush1.msra.mxu0 %v386
      %435 = vmatprep.subr.mxu0 0.0
      %436 = vmatpush1.msra.mxu0 %v387
      %437 = vmatprep.subr.mxu0 0.0
      %438 = vmatpush1.msra.mxu0 0.0
      %439 = vmatprep.subr.mxu0 0.0
      %440 = vmatpush1.msra.mxu0 0.0
      %441 = vmatprep.subr.mxu0 0.0
      %442 = vmatpush1.msra.mxu0 0.0
      %443 = vmatprep.subr.mxu0 0.0
      %444 = vmatpush1.msra.mxu0 0.0
      %445 = vmatprep.subr.mxu0 0.0
      %446 = vmatpush1.msra.mxu0 0.0
      %447 = vmatprep.subr.mxu0 0.0
      %448 = vmatpush1.msra.mxu0 0.0
      %449 = vmatprep.subr.mxu0 0.0
      %450 = vmatpush1.msra.mxu0 0.0
      %451 = vmatprep.subr.mxu0 0.0
      %452 = vmatpush1.msra.mxu0 0.0
      %453 = vmatprep.subr.mxu0 0.0
      %454 = vmatpush1.msra.mxu0 0.0
      %455 = vmatprep.subr.mxu0 0.0
      %456 = vmatpush1.msra.mxu0 0.0
      %457 = vmatprep.subr.mxu0 0.0
      %458 = vmatpush1.msra.mxu0 0.0
      %459 = vmatprep.subr.mxu0 0.0
      %460 = vmatpush1.msra.mxu0 0.0
      %461 = vmatprep.subr.mxu0 0.0
      %462 = vmatpush1.msra.mxu0 0.0
      %463 = vmatprep.subr.mxu0 0.0
      %464 = vmatpush1.msra.mxu0 0.0
      %465 = vmatprep.subr.mxu0 0.0
      %466 = vmatpush1.msra.mxu0 0.0
      %467 = vmatprep.subr.mxu0 0.0
      %468 = vmatpush1.msra.mxu0 0.0
      %469 = vmatprep.subr.mxu0 0.0
      %470 = vmatpush1.msra.mxu0 0.0
      %471 = vmatprep.subr.mxu0 0.0
      %472 = vmatpush1.msra.mxu0 0.0
      %473 = vmatprep.subr.mxu0 0.0
      %474 = vmatpush1.msra.mxu0 0.0
      %475 = vmatprep.subr.mxu0 0.0
      %476 = vmatpush1.msra.mxu0 0.0
      %477 = vmatprep.subr.mxu0 0.0
      %478 = vmatpush1.msra.mxu0 0.0
      %479 = vmatprep.subr.mxu0 0.0
      %480 = vmatpush1.msra.mxu0 0.0
      %481 = vmatprep.subr.mxu0 0.0
      %482 = vmatpush1.msra.mxu0 0.0
      %483 = vmatprep.subr.mxu0 0.0
      %484 = vmatpush1.msra.mxu0 0.0
      %485 = vmatprep.subr.mxu0 0.0
      %486 = vmatpush1.msra.mxu0 0.0
      %487 = vmatprep.subr.mxu0 0.0
      %488 = vmatpush1.msra.mxu0 0.0
      %489 = vmatprep.subr.mxu0 0.0
      %490 = vmatpush1.msra.mxu0 0.0
      %491 = vmatprep.subr.mxu0 0.0
      %492 = vmatpush1.msra.mxu0 0.0
      %493 = vmatprep.mubr.f32.mxu0 0.0
      %494 = vmatmul.mubr.f32.gmra.mrb[0].mxu0 %v418
      %v495 = vpop.f32.mrb[0].mxu0
      %v496 = vadd.f32 %v399, %v495
      %v497 = vpop.f32.mrb[0].mxu0
      %498 = vmatprep.mubr.f32.mxu0 0.0
      %499 = vmatmul.mubr.f32.gmra.mrb[0].mxu0 %v421
      %v500 = vpop.f32.mrb[0].mxu0
      %v501 = vadd.f32 %v404, %v500
      %v502 = vpop.f32.mrb[0].mxu0
      %503 = vmatprep.mubr.f32.mxu0 0.0
      %504 = vmatmul.mubr.f32.gmra.mrb[0].mxu0 %v424
      %v505 = vpop.f32.mrb[0].mxu0
      %v506 = vadd.f32 %v409, %v505
      %v507 = vpop.f32.mrb[0].mxu0
      %508 = vmatprep.mubr.f32.mxu0 0.0
      %509 = vmatmul.mubr.f32.gmra.mrb[0].mxu0 %v427
      %v510 = vpop.f32.mrb[0].mxu0
      %v511 = vadd.f32 %v414, %v510
      %v512 = vpop.f32.mrb[0].mxu0
      %513 = vdwg.mxu0
      %vm514 = vcmask 130048
      %515 = vst.msk [vmem:[%s252] sm:$0xff] %vm514, %v496
      %516 = vst.msk [vmem:[%s252 + $0x8] sm:$0xff] %vm514, %v501
      %517 = vst.msk [vmem:[%s252 + $0x10] sm:$0xff] %vm514, %v506
      %518 = vst.msk [vmem:[%s252 + $0x18] sm:$0xff] %vm514, %v511
      %p519 = scmp.lt.s32.totalorder %s20, 1
      %s520 = scalar_select %p519, %s20, 1
      %p521 = scmp.lt.s32.totalorder %s21, 0
      %s522 = scalar_select %p521, %s21, 0
      %s523 = smul.addr %s520, 4
      %s524 = sadd.s32 %s522, %s523
      %s525 = smul.addr %s524, 8
      %s526 = scalar_lea.vmem %s5, %s525
      // Predicated region
      $region41: #{tpu_custom_call.1} parent=39 // pred_check
        %p527 = pneg %p160
      $region42: #{tpu_custom_call.1} parent=39 // pred_check_branch
        %529 = sbr.rel (%p527) target = $region44
      $region43: #{tpu_custom_call.1} parent=39 // pred_region
        _
      $region44: #{tpu_custom_call.1} parent=39 // pred_fallthru
        _
    $region40: #{tpu_custom_call.1} parent=5 // pred_fallthru
      _
    %p530 = scmp.le.s32.totalorder 2, %s11
    // Predicated region
    $region45: #{tpu_custom_call.1} parent=5 // pred_check
      %p531 = pneg %p530
    $region46: #{tpu_custom_call.1} parent=5 // pred_check_branch
      %533 = sbr.rel (%p531) target = $region48
    $region47: #{tpu_custom_call.1} parent=5 // pred_region
      %s534 = ssub.s32 %s11, 2
      // Predicated region
      $region49: #{tpu_custom_call.1} parent=47 // pred_check
        %p535 = pneg %p166
      $region50: #{tpu_custom_call.1} parent=47 // pred_check_branch
        %537 = sbr.rel (%p535) target = $region52
      $region51: #{tpu_custom_call.1} parent=47 // pred_region
        %p538 = scmp.lt.s32.totalorder %s22, 1
        %s539 = scalar_select %p538, %s22, 1
        %p540 = scmp.lt.s32.totalorder %s23, 0
        %s541 = scalar_select %p540, %s23, 0
        %s542 = smul.addr %s539, 4
        %s543 = sadd.s32 %s541, %s542
        %s544 = smul.addr %s543, 8
        %s545 = scalar_lea.vmem %s5, %s544
      $region52: #{tpu_custom_call.1} parent=47 // pred_fallthru
        _
    $region48: #{tpu_custom_call.1} parent=5 // pred_fallthru
      _
  $region6: #{tpu_custom_call.1} parent=0 // loop_footer
    %s15 = sadd.s32 1, %s11
  $region7: #{tpu_custom_call.1} parent=0 // loop_footer_branch
    %10 = sbr.rel target = $region3
  $region8: #{tpu_custom_call.1} parent=0 // loop_exit
    _

</llo_original>
